<compile_context>
chip_gen: v7x
topology: tpu7x:2x2x1
jax: 0.10.0
libtpu: 0.0.40
codegen_flags: <defaults>
</compile_context>

<pallas_src>
import math

import jax
import jax.numpy as jnp
from jax.experimental import pallas as pl
from jax.experimental.pallas import tpu as pltpu


# ------------------------------------------------------------------ kernels -

def _ln_row_kernel(params_ref, x_ref, o_ref):
    """Per-row LayerNorm; hidden lives on the lane axis of the block."""
    alpha = params_ref[0]
    shift = params_ref[1] + params_ref[2]            # bias + eps (added to output)
    x = x_ref[...].astype(jnp.float32)               # (tr, hidden)
    hidden = x.shape[-1]
    mean = jnp.mean(x, axis=-1, keepdims=True)
    d = x - mean
    # torch.std default is unbiased -> divide by (hidden - 1).
    var = jnp.sum(d * d, axis=-1, keepdims=True) / (hidden - 1)
    # alpha * d / std == d * (alpha * rsqrt(var));  rsqrt runs on the EUP slot.
    o_ref[...] = (d * (alpha * jax.lax.rsqrt(var)) + shift).astype(o_ref.dtype)


def _ln_folded_kernel(params_ref, amean_ref, avar_ref, x_ref, o_ref):
    """Lane-folded LayerNorm: each 128-lane row holds g = 128//hidden logical
    rows.  Segmented mean / unbiased var are computed with block-diagonal MXU
    matmuls (and broadcast back) so every value stays at full lane width and
    the output store is an unmasked, lane-dense vst."""
    alpha = params_ref[0]
    shift = params_ref[1] + params_ref[2]
    x = x_ref[...].astype(jnp.float32)               # (tr, 128)
    # Per-segment mean, broadcast over each segment's lanes.
    mean = jnp.dot(x, amean_ref[...], preferred_element_type=jnp.float32)
    d = x - mean
    # Per-segment unbiased variance (sum(d^2) / (hidden - 1)), broadcast likewise.
    var = jnp.dot(d * d, avar_ref[...], preferred_element_type=jnp.float32)
    o_ref[...] = (d * (alpha * jax.lax.rsqrt(var)) + shift).astype(o_ref.dtype)


# -------------------------------------------------------------- tile sizing -

def _vmem_capacity_bytes():
    try:
        return int(pltpu.get_tpu_info().vmem_capacity_bytes)
    except Exception:
        return 64 * 1024 * 1024            # conservative fallback (covers v7x)


def _sublane_multiple(dtype):
    # f32 -> 8, bf16 -> 16, int8/fp8 -> 32 (sub-32-bit dtypes pack sublanes).
    return max(8, 32 // max(1, dtype.itemsize))


def _choose_tile_rows(rows, width, in_dtype, out_dtype, vmem_cap):
    sub = max(_sublane_multiple(in_dtype), _sublane_multiple(out_dtype))
    # Per-row residency: double-buffered in + out tiles plus ~4 f32 temporaries
    # kept live inside the kernel body.
    bytes_per_row = width * (2 * in_dtype.itemsize + 2 * out_dtype.itemsize + 4 * 4)
    budget = max(4 * 1024 * 1024, vmem_cap // 2)
    tr = max(sub, (budget // bytes_per_row) // sub * sub)
    rows_rounded = ((rows + sub - 1) // sub) * sub
    if tr >= rows_rounded and rows_rounded >= 2 * sub:
        # Split an otherwise single-tile problem so the "parallel" grid axis can
        # span both TensorCores on v7x (a second ~0.35us step is noise on 1-TC chips).
        tr = ((rows_rounded // 2 + sub - 1) // sub) * sub
    tr = min(tr, rows_rounded)
    if rows < sub:
        tr = rows                          # block dim == full array dim is always legal
    return tr


def _vmem_limit(residency_bytes, vmem_cap):
    return int(min(vmem_cap - 4 * 2 ** 20,
                   max(16 * 2 ** 20, residency_bytes + 8 * 2 ** 20)))


# ------------------------------------------------------------------ wrapper -

def layernorm(x, alpha, bias, eps=1e-6):
    """x: (..., hidden). alpha, bias, eps: runtime scalars (shape-(1,) ok)."""
    orig_shape = x.shape
    hidden = int(orig_shape[-1])
    rows = int(math.prod(orig_shape[:-1]))
    out_dtype = x.dtype
    vmem_cap = _vmem_capacity_bytes()

    # Runtime scalar parameters live in SMEM -> no recompile per value.
    params = jnp.stack([
        jnp.asarray(alpha, dtype=jnp.float32).reshape(()),
        jnp.asarray(bias, dtype=jnp.float32).reshape(()),
        jnp.asarray(eps, dtype=jnp.float32).reshape(()),
    ])

    # Lane-dense fold: pack g = 128 // hidden logical rows into one 128-lane
    # row (free row-major reshape) whenever hidden divides 128.
    g = 128 // hidden if (2 <= hidden < 128 and 128 % hidden == 0) else 1
    fold = g > 1 and rows % g == 0

    if fold:
        fh = g * hidden                                   # == 128
        rows_eff, width = rows // g, fh
        x2 = x.reshape(rows_eff, width)

        # Block-diagonal reduction matrices (128x128 f32, resident in VMEM).
        seg = jnp.arange(fh, dtype=jnp.int32) // hidden   # lane -> segment id
        same = seg[:, None] == seg[None, :]
        a_mean = jnp.where(same, 1.0 / hidden, 0.0).astype(jnp.float32)
        a_var = jnp.where(same, 1.0 / (hidden - 1), 0.0).astype(jnp.float32)

        tr = _choose_tile_rows(rows_eff, width, x.dtype, out_dtype, vmem_cap)
        grid = (pl.cdiv(rows_eff, tr),)
        residency = (tr * width * (2 * x.dtype.itemsize + 2 * out_dtype.itemsize + 4 * 4)
                     + 2 * 2 * fh * fh * 4)

        out2 = pl.pallas_call(
            _ln_folded_kernel,
            out_shape=jax.ShapeDtypeStruct((rows_eff, width), out_dtype),
            grid=grid,
            in_specs=[
                pl.BlockSpec(memory_space=pltpu.MemorySpace.SMEM),   # [alpha, bias, eps]
                pl.BlockSpec((fh, fh), lambda i: (0, 0)),            # mean matrix (fetched once)
                pl.BlockSpec((fh, fh), lambda i: (0, 0)),            # var matrix (fetched once)
                pl.BlockSpec((tr, width), lambda i: (i, 0)),         # x tile
            ],
            out_specs=pl.BlockSpec((tr, width), lambda i: (i, 0)),
            compiler_params=pltpu.CompilerParams(
                dimension_semantics=("parallel",),
                vmem_limit_bytes=_vmem_limit(residency, vmem_cap),
            ),
        )(params, a_mean, a_var, x2)
        return out2.reshape(orig_shape)

    # Plain per-row path (hidden >= 128, hidden does not divide 128, or the
    # row count is not a multiple of the fold factor).
    x2 = x.reshape(rows, hidden)
    tr = _choose_tile_rows(rows, hidden, x.dtype, out_dtype, vmem_cap)
    grid = (pl.cdiv(rows, tr),)
    residency = tr * hidden * (2 * x.dtype.itemsize + 2 * out_dtype.itemsize + 4 * 4)

    out2 = pl.pallas_call(
        _ln_row_kernel,
        out_shape=jax.ShapeDtypeStruct((rows, hidden), out_dtype),
        grid=grid,
        in_specs=[
            pl.BlockSpec(memory_space=pltpu.MemorySpace.SMEM),       # [alpha, bias, eps]
            pl.BlockSpec((tr, hidden), lambda i: (i, 0)),            # x tile
        ],
        out_specs=pl.BlockSpec((tr, hidden), lambda i: (i, 0)),
        compiler_params=pltpu.CompilerParams(
            dimension_semantics=("parallel",),
            vmem_limit_bytes=_vmem_limit(residency, vmem_cap),
        ),
    )(params, x2)
    return out2.reshape(orig_shape)


# ---------------------------------------------------------------- reference -

def layernorm_ref(x, alpha, bias, eps=1e-6):
    """Pure-JAX reference mirroring the PyTorch forward."""
    x = x.astype(jnp.float32)
    mean = jnp.mean(x, axis=-1, keepdims=True)
    var = jnp.sum((x - mean) ** 2, axis=-1, keepdims=True) / (x.shape[-1] - 1)
    return alpha * (x - mean) / jnp.sqrt(var) + eps + bias


if __name__ == "__main__":
    key = jax.random.PRNGKey(0)

    # Module declares alpha, bias as shape-(1,) Parameters (torch init is zeros);
    # use deterministic nonzero values so the full normalization path is exercised.
    alpha, bias, eps = 1.0, 0.5, 1e-6

    # 1) Main case from the module spec: small hidden -> lane-folded MXU path.
    batch, seq, hidden = 2, 8, 32
    x = jax.random.normal(key, (batch, seq, hidden), dtype=jnp.float32)
    out = jax.block_until_ready(layernorm(x, alpha, bias, eps))
    ref = layernorm_ref(x, alpha, bias, eps)
    assert out.shape == x.shape and out.dtype == x.dtype
    # Folded path: segmented mean/var go through the MXU; keep a small margin
    # for its reduced-precision accumulation passes.
    assert jnp.allclose(out, ref, atol=1e-3, rtol=1e-3), "folded path mismatch"

    # 2) Folded path with a ragged last grid block (rows not a multiple of tile).
    x2 = jax.random.normal(jax.random.PRNGKey(1), (2, 20, 32), dtype=jnp.float32)
    out2 = jax.block_until_ready(layernorm(x2, alpha, bias, eps))
    assert jnp.allclose(out2, layernorm_ref(x2, alpha, bias, eps),
                        atol=1e-3, rtol=1e-3), "ragged folded path mismatch"

    # 3) Plain per-row path (hidden multiple of 128) with a ragged last block.
    x3 = jax.random.normal(jax.random.PRNGKey(2), (3, 5, 256), dtype=jnp.float32)
    out3 = jax.block_until_ready(layernorm(x3, alpha, bias, eps))
    assert jnp.allclose(out3, layernorm_ref(x3, alpha, bias, eps),
                        atol=1e-5, rtol=1e-5), "row path mismatch"

    print("KERNEL_OK")
</pallas_src>

<mosaic_0001>
module attributes {stable_mosaic.version = 11 : i64} {
  func.func @_ln_folded_kernel(%arg0: i32, %arg1: memref<3xf32, #tpu.memory_space<smem>>, %arg2: memref<128x128xf32, #tpu.memory_space<vmem>>, %arg3: memref<128x128xf32, #tpu.memory_space<vmem>>, %arg4: memref<4x128xf32, #tpu.memory_space<vmem>>, %arg5: memref<4x128xf32, #tpu.memory_space<vmem>>) attributes {dimension_semantics = [#tpu.dimension_semantics<parallel>], iteration_bounds = array<i64: 1>, scalar_prefetch = 0 : i64, scratch_operands = 0 : i64, tpu.core_type = #tpu.core_type<tc>, window_params = [{transform_indices = @transform_0, window_bounds = array<i64: 3>}, {pipeline_mode = #tpu.pipeline_mode<synchronous>, transform_indices = @transform_1, window_bounds = array<i64: 128, 128>}, {pipeline_mode = #tpu.pipeline_mode<synchronous>, transform_indices = @transform_2, window_bounds = array<i64: 128, 128>}, {transform_indices = @transform_3, window_bounds = array<i64: 4, 128>}, {transform_indices = @transform_4, window_bounds = array<i64: 4, 128>}]} {
    %c0 = arith.constant 0 : index
    %0 = memref.load %arg1[%c0] : memref<3xf32, #tpu.memory_space<smem>>
    %c1 = arith.constant 1 : index
    %1 = memref.load %arg1[%c1] : memref<3xf32, #tpu.memory_space<smem>>
    %c2 = arith.constant 2 : index
    %2 = memref.load %arg1[%c2] : memref<3xf32, #tpu.memory_space<smem>>
    %3 = arith.addf %1, %2 : f32
    %c0_0 = arith.constant 0 : index
    %c0_1 = arith.constant 0 : index
    %4 = vector.load %arg4[%c0_0, %c0_1] : memref<4x128xf32, #tpu.memory_space<vmem>>, vector<4x128xf32>
    %c0_2 = arith.constant 0 : index
    %c0_3 = arith.constant 0 : index
    %5 = vector.load %arg2[%c0_2, %c0_3] : memref<128x128xf32, #tpu.memory_space<vmem>>, vector<128x128xf32>
    %cst = arith.constant dense<0.000000e+00> : vector<4x128xf32>
    %6 = tpu.matmul %4, %5, %cst {dimension_numbers = #tpu.dot_dimension_numbers<[1], [0], [0], [1], [0, 0, 1, 1], [], []>} : vector<4x128xf32>, vector<128x128xf32>, vector<4x128xf32> -> vector<4x128xf32>
    %7 = arith.subf %4, %6 : vector<4x128xf32>
    %8 = arith.mulf %7, %7 : vector<4x128xf32>
    %c0_4 = arith.constant 0 : index
    %c0_5 = arith.constant 0 : index
    %9 = vector.load %arg3[%c0_4, %c0_5] : memref<128x128xf32, #tpu.memory_space<vmem>>, vector<128x128xf32>
    %cst_6 = arith.constant dense<0.000000e+00> : vector<4x128xf32>
    %10 = tpu.matmul %8, %9, %cst_6 {dimension_numbers = #tpu.dot_dimension_numbers<[1], [0], [0], [1], [0, 0, 1, 1], [], []>} : vector<4x128xf32>, vector<128x128xf32>, vector<4x128xf32> -> vector<4x128xf32>
    %11 = math.rsqrt %10 : vector<4x128xf32>
    %12 = vector.broadcast %0 : f32 to vector<4x128xf32>
    %13 = arith.mulf %12, %11 : vector<4x128xf32>
    %14 = arith.mulf %7, %13 : vector<4x128xf32>
    %15 = vector.broadcast %3 : f32 to vector<4x128xf32>
    %16 = arith.addf %14, %15 : vector<4x128xf32>
    %c0_7 = arith.constant 0 : index
    %c0_8 = arith.constant 0 : index
    %17 = vector.load %arg5[%c0_7, %c0_8] : memref<4x128xf32, #tpu.memory_space<vmem>>, vector<4x128xf32>
    tpu.vector_store %arg5[%c0_7, %c0_8], %16 {strides = array<i32>} : memref<4x128xf32, #tpu.memory_space<vmem>>, vector<4x128xf32>,
    return
  }
  func.func @transform_0(%arg0: i32) -> i32 {
    %c0_i32 = arith.constant 0 : i32
    %c0_i32_0 = arith.constant 0 : i32
    return %c0_i32 : i32
  }
  func.func @transform_1(%arg0: i32) -> (i32, i32) {
    %c0_i32 = arith.constant 0 : i32
    %c0_i32_0 = arith.constant 0 : i32
    %c0_i32_1 = arith.constant 0 : i32
    return %c0_i32, %c0_i32_0 : i32, i32
  }
  func.func @transform_2(%arg0: i32) -> (i32, i32) {
    %c0_i32 = arith.constant 0 : i32
    %c0_i32_0 = arith.constant 0 : i32
    %c0_i32_1 = arith.constant 0 : i32
    return %c0_i32, %c0_i32_0 : i32, i32
  }
  func.func @transform_3(%arg0: i32) -> (i32, i32) {
    %c0_i32 = arith.constant 0 : i32
    %c0_i32_0 = arith.constant 0 : i32
    return %arg0, %c0_i32 : i32, i32
  }
  func.func @transform_4(%arg0: i32) -> (i32, i32) {
    %c0_i32 = arith.constant 0 : i32
    %c0_i32_0 = arith.constant 0 : i32
    return %arg0, %c0_i32 : i32, i32
  }
}

</mosaic_0001>

<llo_original>
// kernel: tpu_custom_call.1
$region0: #{tpu_custom_call.1}
  #allocation0 [shape = 'u32[]', space=smem, size = 0x4, offset = 0x4, fixed_abs, tag = 'smem constant byte address 0x4 - core index']
  #allocation1 [shape = 'u32[144,128]{1,0:T(1,128)}', space=vmem, size = 0x12000, scoped, tag = 'internal scratch']
  %s0 = inlined_call_operand.hbm [shape: f32[3], index: 0, kind: input, shape index: {}]
  %s1 = inlined_call_operand.hbm [shape: f32[128,128], index: 1, kind: input, shape index: {}]
  %s2 = inlined_call_operand.hbm [shape: f32[128,128], index: 2, kind: input, shape index: {}]
  %s3 = inlined_call_operand.vmem [shape: f32[4,128], index: 3, kind: input, shape index: {}]
  %s4 = inlined_call_operand.hbm [shape: f32[4,128], index: 4, kind: output, shape index: {}]
  %s5 = sld [smem:[#allocation0]]
  $region38: #{tpu_custom_call.1} parent=0
    _
  %s7 = ssub.s32 1, %s5
  %s8 = scalar_select 0, %s7, %s5
  $region1: #{tpu_custom_call.1} parent=0
    #allocation2 [shape = 'u8[512]{0}', space=smem, size = 0x200, scoped, tag = 'input window, operand 0, single buffered']
    #allocation3 [shape = 's32[1]{0}', space=sflag, size = 0x4, scoped, tag = 'scoped memory for tpu_custom_call.1']
    #allocation4 [shape = 's32[1]{0}', space=sflag, size = 0x4, scoped, tag = 'scoped memory for tpu_custom_call.1']
    #allocation5 [shape = 's32[1]{0}', space=sflag, size = 0x4, scoped, tag = 'scoped memory for tpu_custom_call.1']
    #allocation6 [shape = 'u8[65536]{0}', space=vmem, size = 0x10000, scoped, tag = 'input window, operand 1, single buffered']
    #allocation7 [shape = 'u8[65536]{0}', space=vmem, size = 0x10000, scoped, tag = 'input window, operand 2, single buffered']
    #allocation8 [shape = 's32[1]{0}', space=sflag, size = 0x4, scoped, tag = 'scoped memory for tpu_custom_call.1']
    #allocation9 [shape = 'u8[2048]{0}', space=vmem, size = 0x800, scoped, tag = 'output window, operand 0, single buffered']
    %9 = vsyncpa [#allocation5], 0
    %10 = vsyncpa [#allocation3], 0
    %11 = vsyncpa [#allocation8], 0
    %12 = vsyncpa [#allocation4], 0
    // Predicated region
    $region2: #{tpu_custom_call.1} parent=1 // pred_check
      _
    $region3: #{tpu_custom_call.1} parent=1 // pred_check_branch
      %14 = sbr.rel (0) target = $region5
    $region4: #{tpu_custom_call.1} parent=1 // pred_region
      %s16 = ssub.s32 16, 16
      %17 = vsyncadd [#allocation5], %s16
      %20 = dma.hbm_to_smem %s0, 16, [#allocation2], [#allocation5]
    $region5: #{tpu_custom_call.1} parent=1 // pred_fallthru
      _
    // Predicated region
    $region6: #{tpu_custom_call.1} parent=1 // pred_check
      _
    $region7: #{tpu_custom_call.1} parent=1 // pred_check_branch
      %22 = sbr.rel (0) target = $region9
    $region8: #{tpu_custom_call.1} parent=1 // pred_region
      %s24 = ssub.s32 2048, 2048
      %25 = vsyncadd [#allocation3], %s24
      %s26 = sshll.u32 [#allocation6], 4
      %s27 = int_to_ptr.vmem [resolvable:$true] %s26
      %32 = dma.hbm_to_vmem [thread:$0]  %s1, 2048, %s27, [#allocation3], 128, 128, 8
    $region9: #{tpu_custom_call.1} parent=1 // pred_fallthru
      _
    // Predicated region
    $region10: #{tpu_custom_call.1} parent=1 // pred_check
      _
    $region11: #{tpu_custom_call.1} parent=1 // pred_check_branch
      %34 = sbr.rel (0) target = $region13
    $region12: #{tpu_custom_call.1} parent=1 // pred_region
      %s36 = ssub.s32 2048, 2048
      %37 = vsyncadd [#allocation8], %s36
      %s38 = sshll.u32 [#allocation7], 4
      %s39 = int_to_ptr.vmem [resolvable:$true] %s38
      %44 = dma.hbm_to_vmem [thread:$0]  %s2, 2048, %s39, [#allocation8], 128, 128, 8
    $region13: #{tpu_custom_call.1} parent=1 // pred_fallthru
      _
    // Predicated region
    $region14: #{tpu_custom_call.1} parent=1 // pred_check
      _
    $region15: #{tpu_custom_call.1} parent=1 // pred_check_branch
      %46 = sbr.rel (0) target = $region17
    $region16: #{tpu_custom_call.1} parent=1 // pred_region
      _
    $region17: #{tpu_custom_call.1} parent=1 // pred_fallthru
      _
    // Predicated region
    $region18: #{tpu_custom_call.1} parent=1 // pred_check
      _
    $region19: #{tpu_custom_call.1} parent=1 // pred_check_branch
      %48 = sbr.rel (0) target = $region21
    $region20: #{tpu_custom_call.1} parent=1 // pred_region
      %49 = dma.done [#allocation5], 16
    $region21: #{tpu_custom_call.1} parent=1 // pred_fallthru
      _
    // Predicated region
    $region22: #{tpu_custom_call.1} parent=1 // pred_check
      _
    $region23: #{tpu_custom_call.1} parent=1 // pred_check_branch
      %51 = sbr.rel (0) target = $region25
    $region24: #{tpu_custom_call.1} parent=1 // pred_region
      %52 = dma.done [#allocation3], 2048
    $region25: #{tpu_custom_call.1} parent=1 // pred_fallthru
      _
    // Predicated region
    $region26: #{tpu_custom_call.1} parent=1 // pred_check
      _
    $region27: #{tpu_custom_call.1} parent=1 // pred_check_branch
      %54 = sbr.rel (0) target = $region29
    $region28: #{tpu_custom_call.1} parent=1 // pred_region
      %55 = dma.done [#allocation8], 2048
    $region29: #{tpu_custom_call.1} parent=1 // pred_fallthru
      _
    %56 = sfence
    %s57 = sld [smem:[#allocation2]]
    %s58 = sld [smem:[#allocation2 + $0x1]]
    %s59 = sld [smem:[#allocation2 + $0x2]]
    %s60 = sadd.f32 %s58, %s59
    %v61 = vld [vmem:[%s3] sm:$0xf]
    %v62 = vld [vmem:[#allocation6] sm:$0xff]
    %v63 = vld [vmem:[#allocation6 + $0x8] sm:$0xff]
    %v64 = vld [vmem:[#allocation6 + $0x10] sm:$0xff]
    %v65 = vld [vmem:[#allocation6 + $0x18] sm:$0xff]
    %v66 = vld [vmem:[#allocation6 + $0x20] sm:$0xff]
    %v67 = vld [vmem:[#allocation6 + $0x28] sm:$0xff]
    %v68 = vld [vmem:[#allocation6 + $0x30] sm:$0xff]
    %v69 = vld [vmem:[#allocation6 + $0x38] sm:$0xff]
    %v70 = vld [vmem:[#allocation6 + $0x40] sm:$0xff]
    %v71 = vld [vmem:[#allocation6 + $0x48] sm:$0xff]
    %v72 = vld [vmem:[#allocation6 + $0x50] sm:$0xff]
    %v73 = vld [vmem:[#allocation6 + $0x58] sm:$0xff]
    %v74 = vld [vmem:[#allocation6 + $0x60] sm:$0xff]
    %v75 = vld [vmem:[#allocation6 + $0x68] sm:$0xff]
    %v76 = vld [vmem:[#allocation6 + $0x70] sm:$0xff]
    %v77 = vld [vmem:[#allocation6 + $0x78] sm:$0xff]
    %78 = vmatprep.subr.mxu0 0.0
    %79 = vmatpush1.msra.mxu0 %v62
    %80 = vmatprep.subr.mxu0 0.0
    %81 = vmatpush1.msra.mxu0 %v63
    %82 = vmatprep.subr.mxu0 0.0
    %83 = vmatpush1.msra.mxu0 %v64
    %84 = vmatprep.subr.mxu0 0.0
    %85 = vmatpush1.msra.mxu0 %v65
    %86 = vmatprep.subr.mxu0 0.0
    %87 = vmatpush1.msra.mxu0 %v66
    %88 = vmatprep.subr.mxu0 0.0
    %89 = vmatpush1.msra.mxu0 %v67
    %90 = vmatprep.subr.mxu0 0.0
    %91 = vmatpush1.msra.mxu0 %v68
    %92 = vmatprep.subr.mxu0 0.0
    %93 = vmatpush1.msra.mxu0 %v69
    %94 = vmatprep.subr.mxu0 0.0
    %95 = vmatpush1.msra.mxu0 %v70
    %96 = vmatprep.subr.mxu0 0.0
    %97 = vmatpush1.msra.mxu0 %v71
    %98 = vmatprep.subr.mxu0 0.0
    %99 = vmatpush1.msra.mxu0 %v72
    %100 = vmatprep.subr.mxu0 0.0
    %101 = vmatpush1.msra.mxu0 %v73
    %102 = vmatprep.subr.mxu0 0.0
    %103 = vmatpush1.msra.mxu0 %v74
    %104 = vmatprep.subr.mxu0 0.0
    %105 = vmatpush1.msra.mxu0 %v75
    %106 = vmatprep.subr.mxu0 0.0
    %107 = vmatpush1.msra.mxu0 %v76
    %108 = vmatprep.subr.mxu0 0.0
    %109 = vmatpush1.msra.mxu0 %v77
    %110 = vmatprep.subr.mxu0 0.0
    %111 = vmatpush1.msra.mxu0 0.0
    %112 = vmatprep.subr.mxu0 0.0
    %113 = vmatpush1.msra.mxu0 0.0
    %114 = vmatprep.subr.mxu0 0.0
    %115 = vmatpush1.msra.mxu0 0.0
    %116 = vmatprep.subr.mxu0 0.0
    %117 = vmatpush1.msra.mxu0 0.0
    %118 = vmatprep.subr.mxu0 0.0
    %119 = vmatpush1.msra.mxu0 0.0
    %120 = vmatprep.subr.mxu0 0.0
    %121 = vmatpush1.msra.mxu0 0.0
    %122 = vmatprep.subr.mxu0 0.0
    %123 = vmatpush1.msra.mxu0 0.0
    %124 = vmatprep.subr.mxu0 0.0
    %125 = vmatpush1.msra.mxu0 0.0
    %126 = vmatprep.subr.mxu0 0.0
    %127 = vmatpush1.msra.mxu0 0.0
    %128 = vmatprep.subr.mxu0 0.0
    %129 = vmatpush1.msra.mxu0 0.0
    %130 = vmatprep.subr.mxu0 0.0
    %131 = vmatpush1.msra.mxu0 0.0
    %132 = vmatprep.subr.mxu0 0.0
    %133 = vmatpush1.msra.mxu0 0.0
    %134 = vmatprep.subr.mxu0 0.0
    %135 = vmatpush1.msra.mxu0 0.0
    %136 = vmatprep.subr.mxu0 0.0
    %137 = vmatpush1.msra.mxu0 0.0
    %138 = vmatprep.subr.mxu0 0.0
    %139 = vmatpush1.msra.mxu0 0.0
    %140 = vmatprep.subr.mxu0 0.0
    %141 = vmatpush1.msra.mxu0 0.0
    %142 = vmatprep.mubr.f32.mxu0 0.0
    %143 = vmatmul.mubr.f32.gmra.mrb[0].mxu0 %v61
    %v144 = vpop.f32.mrb[0].mxu0
    %v145 = vadd.f32 0.0, %v144
    %v146 = vpop.f32.mrb[0].mxu0
    %147 = vdwg.mxu0
    %v148 = vsub.f32 %v61, %v145
    %v149 = vmul.f32 %v148, %v148
    %v150 = vld [vmem:[#allocation7] sm:$0xff]
    %v151 = vld [vmem:[#allocation7 + $0x8] sm:$0xff]
    %v152 = vld [vmem:[#allocation7 + $0x10] sm:$0xff]
    %v153 = vld [vmem:[#allocation7 + $0x18] sm:$0xff]
    %v154 = vld [vmem:[#allocation7 + $0x20] sm:$0xff]
    %v155 = vld [vmem:[#allocation7 + $0x28] sm:$0xff]
    %v156 = vld [vmem:[#allocation7 + $0x30] sm:$0xff]
    %v157 = vld [vmem:[#allocation7 + $0x38] sm:$0xff]
    %v158 = vld [vmem:[#allocation7 + $0x40] sm:$0xff]
    %v159 = vld [vmem:[#allocation7 + $0x48] sm:$0xff]
    %v160 = vld [vmem:[#allocation7 + $0x50] sm:$0xff]
    %v161 = vld [vmem:[#allocation7 + $0x58] sm:$0xff]
    %v162 = vld [vmem:[#allocation7 + $0x60] sm:$0xff]
    %v163 = vld [vmem:[#allocation7 + $0x68] sm:$0xff]
    %v164 = vld [vmem:[#allocation7 + $0x70] sm:$0xff]
    %v165 = vld [vmem:[#allocation7 + $0x78] sm:$0xff]
    %166 = vmatprep.subr.mxu0 0.0
    %167 = vmatpush1.msra.mxu0 %v150
    %168 = vmatprep.subr.mxu0 0.0
    %169 = vmatpush1.msra.mxu0 %v151
    %170 = vmatprep.subr.mxu0 0.0
    %171 = vmatpush1.msra.mxu0 %v152
    %172 = vmatprep.subr.mxu0 0.0
    %173 = vmatpush1.msra.mxu0 %v153
    %174 = vmatprep.subr.mxu0 0.0
    %175 = vmatpush1.msra.mxu0 %v154
    %176 = vmatprep.subr.mxu0 0.0
    %177 = vmatpush1.msra.mxu0 %v155
    %178 = vmatprep.subr.mxu0 0.0
    %179 = vmatpush1.msra.mxu0 %v156
    %180 = vmatprep.subr.mxu0 0.0
    %181 = vmatpush1.msra.mxu0 %v157
    %182 = vmatprep.subr.mxu0 0.0
    %183 = vmatpush1.msra.mxu0 %v158
    %184 = vmatprep.subr.mxu0 0.0
    %185 = vmatpush1.msra.mxu0 %v159
    %186 = vmatprep.subr.mxu0 0.0
    %187 = vmatpush1.msra.mxu0 %v160
    %188 = vmatprep.subr.mxu0 0.0
    %189 = vmatpush1.msra.mxu0 %v161
    %190 = vmatprep.subr.mxu0 0.0
    %191 = vmatpush1.msra.mxu0 %v162
    %192 = vmatprep.subr.mxu0 0.0
    %193 = vmatpush1.msra.mxu0 %v163
    %194 = vmatprep.subr.mxu0 0.0
    %195 = vmatpush1.msra.mxu0 %v164
    %196 = vmatprep.subr.mxu0 0.0
    %197 = vmatpush1.msra.mxu0 %v165
    %198 = vmatprep.subr.mxu0 0.0
    %199 = vmatpush1.msra.mxu0 0.0
    %200 = vmatprep.subr.mxu0 0.0
    %201 = vmatpush1.msra.mxu0 0.0
    %202 = vmatprep.subr.mxu0 0.0
    %203 = vmatpush1.msra.mxu0 0.0
    %204 = vmatprep.subr.mxu0 0.0
    %205 = vmatpush1.msra.mxu0 0.0
    %206 = vmatprep.subr.mxu0 0.0
    %207 = vmatpush1.msra.mxu0 0.0
    %208 = vmatprep.subr.mxu0 0.0
    %209 = vmatpush1.msra.mxu0 0.0
    %210 = vmatprep.subr.mxu0 0.0
    %211 = vmatpush1.msra.mxu0 0.0
    %212 = vmatprep.subr.mxu0 0.0
    %213 = vmatpush1.msra.mxu0 0.0
    %214 = vmatprep.subr.mxu0 0.0
    %215 = vmatpush1.msra.mxu0 0.0
    %216 = vmatprep.subr.mxu0 0.0
    %217 = vmatpush1.msra.mxu0 0.0
    %218 = vmatprep.subr.mxu0 0.0
    %219 = vmatpush1.msra.mxu0 0.0
    %220 = vmatprep.subr.mxu0 0.0
    %221 = vmatpush1.msra.mxu0 0.0
    %222 = vmatprep.subr.mxu0 0.0
    %223 = vmatpush1.msra.mxu0 0.0
    %224 = vmatprep.subr.mxu0 0.0
    %225 = vmatpush1.msra.mxu0 0.0
    %226 = vmatprep.subr.mxu0 0.0
    %227 = vmatpush1.msra.mxu0 0.0
    %228 = vmatprep.subr.mxu0 0.0
    %229 = vmatpush1.msra.mxu0 0.0
    %230 = vmatprep.mubr.f32.mxu0 0.0
    %231 = vmatmul.mubr.f32.gmra.mrb[0].mxu0 %v149
    %v232 = vpop.f32.mrb[0].mxu0
    %v233 = vadd.f32 0.0, %v232
    %v234 = vpop.f32.mrb[0].mxu0
    %235 = vdwg.mxu0
    %v236 = vrsqrt.pop %v233
    %v237 = vstv %s57
    %v238 = vmul.f32 %v237, %v236
    %v239 = vmul.f32 %v148, %v238
    %v240 = vstv %s60
    %v241 = vadd.f32 %v239, %v240
    %242 = vst [vmem:[#allocation9] sm:$0xf] %v241
    // Predicated region
    $region30: #{tpu_custom_call.1} parent=1 // pred_check
      _
    $region31: #{tpu_custom_call.1} parent=1 // pred_check_branch
      %244 = sbr.rel (0) target = $region33
    $region32: #{tpu_custom_call.1} parent=1 // pred_region
      %s246 = ssub.s32 64, 64
      %247 = vsyncadd [#allocation4], %s246
      %s249 = sshll.u32 [#allocation9], 4
      %s250 = int_to_ptr.vmem [resolvable:$true] %s249
      %252 = dma.vmem_to_hbm [thread:$0]  %s250, 64, %s4, [#allocation4]
    $region33: #{tpu_custom_call.1} parent=1 // pred_fallthru
      _
    // Predicated region
    $region34: #{tpu_custom_call.1} parent=1 // pred_check
      _
    $region35: #{tpu_custom_call.1} parent=1 // pred_check_branch
      %254 = sbr.rel (0) target = $region37
    $region36: #{tpu_custom_call.1} parent=1 // pred_region
      %255 = dma.done [#allocation4], 64
    $region37: #{tpu_custom_call.1} parent=1 // pred_fallthru
      _
    %256 = vsyncpa [#allocation3], 1
    %257 = vsyncpa [#allocation8], 1
    %258 = vsyncpa [#allocation4], 1
    %259 = vsyncpa [#allocation5], 1

</llo_original>
